<compile_context>
chip_gen: v6e
topology: v6e:2x2x1
jax: 0.10.0
libtpu: 0.0.40
codegen_flags: <defaults>
</compile_context>

<pallas_src>
import functools

import jax
import jax.numpy as jnp
from jax.experimental import pallas as pl
from jax.experimental.pallas import tpu as pltpu

LN_EPS = 1e-5


def _round_up(x, m):
    return (x + m - 1) // m * m


def _ffn_kernel(x_ref, w1_ref, b1_ref, w2_ref, b2_ref, g_ref, beta_ref,
                o_ref, acc_ref):
    # x_ref: (tm, d_model); w1_ref: (d_model, tk_ff); w2_ref: (tk_ff, d_model)
    j = pl.program_id(1)

    x = x_ref[...]
    # Cast the activation operand to the weight dtype so bf16 weights keep the
    # MXU in native bf16 mode (no-op cast when everything is f32).
    h = jnp.dot(x.astype(w1_ref.dtype), w1_ref[...],
                preferred_element_type=jnp.float32)
    h = jnp.maximum(h + b1_ref[...], 0.0)

    partial = jnp.dot(h.astype(w2_ref.dtype), w2_ref[...],
                      preferred_element_type=jnp.float32)

    @pl.when(j == 0)
    def _():
        # First d_ff slice: write directly (b2 folded in) -- no zero-fill pass.
        acc_ref[...] = partial + b2_ref[...]

    @pl.when(j > 0)
    def _():
        acc_ref[...] += partial

    # TODO(synk): dropout(p=0.1) omitted -- eval-mode identity. Training mode
    # would need pltpu.prng_seed + pltpu.prng_random_bits masking here.

    @pl.when(j == pl.num_programs(1) - 1)
    def _():
        # residual + LayerNorm over d_model, in f32.
        z = x.astype(jnp.float32) + acc_ref[...]
        mean = jnp.mean(z, axis=-1, keepdims=True)
        zc = z - mean
        var = jnp.mean(zc * zc, axis=-1, keepdims=True)
        # fold gamma into the rsqrt scale (one fewer full-width multiply chain)
        scale = jax.lax.rsqrt(var + LN_EPS) * g_ref[...]
        o_ref[...] = (zc * scale + beta_ref[...]).astype(o_ref.dtype)


def _weight_spec(block_shape, index_map, single_buffer):
    """BlockSpec for a weight slice; single-buffer it when it stays resident."""
    if single_buffer:
        try:
            return pl.BlockSpec(block_shape, index_map,
                                pipeline_mode=pl.Buffered(1))
        except Exception:  # pipeline_mode / Buffered(1) unsupported -> default
            pass
    return pl.BlockSpec(block_shape, index_map)


@functools.partial(jax.jit, static_argnames=("tm", "tk_ff"))
def position_wise_ffn(x, w1, b1, w2, b2, gamma, beta, *, tm=None, tk_ff=None):
    """x: (batch, seq, d_model) -> (batch, seq, d_model). Dropout = identity."""
    batch, seq, d_model = x.shape
    d_ff = w1.shape[1]
    n = batch * seq

    x_itemsize = jnp.dtype(x.dtype).itemsize
    w_itemsize = jnp.dtype(w1.dtype).itemsize

    # --- generation-aware VMEM capacity --------------------------------------
    try:
        vmem_cap = int(pltpu.get_tpu_info().vmem_capacity_bytes)
    except Exception:
        vmem_cap = 128 << 20
    small_vmem = vmem_cap <= (64 << 20)        # v7x-class TensorCore

    # --- d_ff tiling: bound resident weight-slice VMEM -----------------------
    # ~32 MiB of weight slices on 128 MiB parts, ~20 MiB on 64 MiB parts.
    weight_budget = max(20 << 20, min(32 << 20, vmem_cap // 4))
    if tk_ff is None:
        tk_ff = d_ff
        # Fully-resident weights are single-buffered -> one copy of W1 + W2.
        if 2 * d_model * d_ff * w_itemsize > weight_budget:
            # Tiled weight slices are double-buffered -> two copies of each.
            while (4 * d_model * tk_ff * w_itemsize > weight_budget
                   and tk_ff > 512 and tk_ff % 2 == 0
                   and (tk_ff // 2) % 128 == 0):
                tk_ff //= 2
    assert d_ff % tk_ff == 0
    single_buffer_w = (tk_ff == d_ff)   # weight block index constant over grid

    # --- row tiling -----------------------------------------------------------
    row_align = {4: 8, 2: 16, 1: 32}.get(x_itemsize, 8)
    if tm is None:
        # When weights are re-streamed once per row tile, a bigger tile keeps
        # the kernel MXU-bound instead of HBM-bound (v6e needs ~>=640 rows).
        tm = 256 if single_buffer_w else 512
    tm_eff = min(tm, _round_up(n, row_align))
    n_pad = _round_up(n, tm_eff)

    # v7x has 2 TensorCores: make sure the "parallel" row axis has >= 2 tiles.
    if small_vmem and n_pad // tm_eff < 2 and n_pad >= 2 * row_align:
        tm_eff = _round_up((n_pad + 1) // 2, row_align)
        n_pad = _round_up(n, tm_eff)

    x2d = x.reshape(n, d_model)
    if n_pad != n:
        x2d = jnp.pad(x2d, ((0, n_pad - n), (0, 0)))

    b1_2d = b1.reshape(1, d_ff)
    b2_2d = b2.reshape(1, d_model)
    g_2d = gamma.reshape(1, d_model)
    be_2d = beta.reshape(1, d_model)

    grid = (n_pad // tm_eff, d_ff // tk_ff)
    num_row_tiles = grid[0]

    # --- VMEM estimate & limit (capped by physical capacity) ------------------
    w_copies = 1 if single_buffer_w else 2
    est = (2 * w_copies * d_model * tk_ff * w_itemsize   # W1 + W2 slices
           + 4 * tm_eff * d_model * x_itemsize           # x / out tiles, 2-buffered
           + tm_eff * d_model * 4                        # f32 accumulator scratch
           + (3 * tm_eff * tk_ff * 4) // 2               # fc1 interm. (f32 + cast copy)
           + 2 * (d_ff + 3 * d_model) * 4                # biases / LN params
           + (4 << 20))                                  # headroom
    vmem_limit = int(min(max(est, 32 << 20), (vmem_cap * 85) // 100))

    # --- advisory cost: weights re-read once per row tile when tk_ff < d_ff ---
    weight_reads = 1 if single_buffer_w else num_row_tiles
    cost = pl.CostEstimate(
        flops=4 * n_pad * d_model * d_ff,                # two matmuls
        transcendentals=n_pad,                           # one rsqrt per row
        bytes_accessed=(weight_reads * 2 * d_model * d_ff * w_itemsize
                        + 2 * n_pad * d_model * x_itemsize   # x read + out write
                        + (d_ff + 3 * d_model) * 4),
    )

    out2d = pl.pallas_call(
        _ffn_kernel,
        out_shape=jax.ShapeDtypeStruct((n_pad, d_model), x.dtype),
        grid_spec=pltpu.PrefetchScalarGridSpec(
            num_scalar_prefetch=0,
            grid=grid,
            in_specs=[
                pl.BlockSpec((tm_eff, d_model), lambda i, j: (i, 0)),      # x rows
                _weight_spec((d_model, tk_ff), lambda i, j: (0, j),
                             single_buffer_w),                             # W1 slice
                pl.BlockSpec((1, tk_ff), lambda i, j: (0, j)),             # b1 slice
                _weight_spec((tk_ff, d_model), lambda i, j: (j, 0),
                             single_buffer_w),                             # W2 slice
                pl.BlockSpec((1, d_model), lambda i, j: (0, 0)),           # b2
                pl.BlockSpec((1, d_model), lambda i, j: (0, 0)),           # ln gamma
                pl.BlockSpec((1, d_model), lambda i, j: (0, 0)),           # ln beta
            ],
            out_specs=pl.BlockSpec((tm_eff, d_model), lambda i, j: (i, 0)),
            scratch_shapes=[pltpu.VMEM((tm_eff, d_model), jnp.float32)],
        ),
        compiler_params=pltpu.CompilerParams(
            dimension_semantics=("parallel", "arbitrary"),
            vmem_limit_bytes=vmem_limit),
        cost_estimate=cost,
    )(x2d, w1, b1_2d, w2, b2_2d, g_2d, be_2d)

    if n_pad != n:
        out2d = out2d[:n]
    return out2d.reshape(batch, seq, d_model)


def _reference(x, w1, b1, w2, b2, gamma, beta):
    xf = x.astype(jnp.float32)
    h = jnp.maximum(xf @ w1.astype(jnp.float32) + b1, 0.0)
    y = h @ w2.astype(jnp.float32) + b2
    z = xf + y
    mean = jnp.mean(z, axis=-1, keepdims=True)
    var = jnp.mean((z - mean) ** 2, axis=-1, keepdims=True)
    return ((z - mean) * jax.lax.rsqrt(var + LN_EPS)) * gamma + beta


if __name__ == "__main__":
    # Small shapes consistent with the module: d_model x d_ff linear layers.
    batch, seq, d_model, d_ff = 2, 8, 128, 256

    key = jax.random.PRNGKey(0)
    kx, k1, kb1, k2, kb2 = jax.random.split(key, 5)

    x = jax.random.normal(kx, (batch, seq, d_model), dtype=jnp.float32)

    # Deterministic synthetic parameters (nn.Linear-style scaling).
    w1 = jax.random.normal(k1, (d_model, d_ff), dtype=jnp.float32) / jnp.sqrt(d_model)
    b1 = jax.random.normal(kb1, (d_ff,), dtype=jnp.float32) * 0.01
    w2 = jax.random.normal(k2, (d_ff, d_model), dtype=jnp.float32) / jnp.sqrt(d_ff)
    b2 = jax.random.normal(kb2, (d_model,), dtype=jnp.float32) * 0.01
    gamma = jnp.ones((d_model,), dtype=jnp.float32)
    beta = jnp.zeros((d_model,), dtype=jnp.float32)

    ref = _reference(x, w1, b1, w2, b2, gamma, beta)

    # Default config: weights fully resident, single-buffered, one d_ff step.
    out = position_wise_ffn(x, w1, b1, w2, b2, gamma, beta)
    jax.block_until_ready(out)
    assert out.shape == (batch, seq, d_model)
    assert jnp.allclose(out, ref, atol=1e-4, rtol=1e-4), "mismatch (default tiling)"

    # Multi-row-tile + tiled-d_ff reduction/accumulator path.
    out2 = position_wise_ffn(x, w1, b1, w2, b2, gamma, beta, tm=8, tk_ff=128)
    jax.block_until_ready(out2)
    assert jnp.allclose(out2, ref, atol=1e-4, rtol=1e-4), "mismatch (tiled d_ff)"

    # bf16 activations/weights: exercises 16-row alignment + native-rate MXU.
    xb = x.astype(jnp.bfloat16)
    w1b, w2b = w1.astype(jnp.bfloat16), w2.astype(jnp.bfloat16)
    refb = _reference(xb, w1b, b1, w2b, b2, gamma, beta)
    outb = position_wise_ffn(xb, w1b, b1, w2b, b2, gamma, beta)
    jax.block_until_ready(outb)
    assert jnp.allclose(outb.astype(jnp.float32), refb, atol=1.5e-1, rtol=1.5e-1), \
        "mismatch (bf16)"

    print("KERNEL_OK")
</pallas_src>

<mosaic_0001>
module attributes {stable_mosaic.version = 11 : i64} {
  func.func @_ffn_kernel(%arg0: i32, %arg1: i32, %arg2: memref<16x128xf32, #tpu.memory_space<vmem>>, %arg3: memref<128x256xf32, #tpu.memory_space<vmem>>, %arg4: memref<1x256xf32, #tpu.memory_space<vmem>>, %arg5: memref<256x128xf32, #tpu.memory_space<vmem>>, %arg6: memref<1x128xf32, #tpu.memory_space<vmem>>, %arg7: memref<1x128xf32, #tpu.memory_space<vmem>>, %arg8: memref<1x128xf32, #tpu.memory_space<vmem>>, %arg9: memref<16x128xf32, #tpu.memory_space<vmem>>, %arg10: memref<16x128xf32, #tpu.memory_space<vmem>>) attributes {dimension_semantics = [#tpu.dimension_semantics<parallel>, #tpu.dimension_semantics<arbitrary>], iteration_bounds = array<i64: 1, 1>, scalar_prefetch = 0 : i64, scratch_operands = 1 : i64, tpu.core_type = #tpu.core_type<tc>, window_params = [{transform_indices = @transform_0, window_bounds = array<i64: 16, 128>}, {pipeline_mode = #tpu.pipeline_mode<synchronous>, transform_indices = @transform_1, window_bounds = array<i64: 128, 256>}, {transform_indices = @transform_2, window_bounds = array<i64: 1, 256>}, {pipeline_mode = #tpu.pipeline_mode<synchronous>, transform_indices = @transform_3, window_bounds = array<i64: 256, 128>}, {pipeline_mode = #tpu.pipeline_mode<synchronous>, transform_indices = @transform_4, window_bounds = array<i64: 1, 128>}, {pipeline_mode = #tpu.pipeline_mode<synchronous>, transform_indices = @transform_5, window_bounds = array<i64: 1, 128>}, {pipeline_mode = #tpu.pipeline_mode<synchronous>, transform_indices = @transform_6, window_bounds = array<i64: 1, 128>}, {transform_indices = @transform_7, window_bounds = array<i64: 16, 128>}]} {
    %c0 = arith.constant 0 : index
    %c0_0 = arith.constant 0 : index
    %0 = vector.load %arg2[%c0, %c0_0] : memref<16x128xf32, #tpu.memory_space<vmem>>, vector<16x128xf32>
    %c0_1 = arith.constant 0 : index
    %c0_2 = arith.constant 0 : index
    %1 = vector.load %arg3[%c0_1, %c0_2] : memref<128x256xf32, #tpu.memory_space<vmem>>, vector<128x256xf32>
    %cst = arith.constant dense<0.000000e+00> : vector<16x256xf32>
    %2 = tpu.matmul %0, %1, %cst {dimension_numbers = #tpu.dot_dimension_numbers<[1], [0], [0], [1], [0, 0, 1, 1], [], []>} : vector<16x128xf32>, vector<128x256xf32>, vector<16x256xf32> -> vector<16x256xf32>
    %c0_3 = arith.constant 0 : index
    %c0_4 = arith.constant 0 : index
    %3 = vector.load %arg4[%c0_3, %c0_4] : memref<1x256xf32, #tpu.memory_space<vmem>>, vector<1x256xf32>
    %4 = vector.broadcast %3 : vector<1x256xf32> to vector<16x256xf32>
    %5 = arith.addf %2, %4 : vector<16x256xf32>
    %cst_5 = arith.constant 0.000000e+00 : f32
    %6 = vector.broadcast %cst_5 : f32 to vector<16x256xf32>
    %7 = arith.maximumf %5, %6 : vector<16x256xf32>
    %c0_6 = arith.constant 0 : index
    %c0_7 = arith.constant 0 : index
    %8 = vector.load %arg5[%c0_6, %c0_7] : memref<256x128xf32, #tpu.memory_space<vmem>>, vector<256x128xf32>
    %cst_8 = arith.constant dense<0.000000e+00> : vector<16x128xf32>
    %9 = tpu.matmul %7, %8, %cst_8 {dimension_numbers = #tpu.dot_dimension_numbers<[1], [0], [0], [1], [0, 0, 1, 1], [], []>} : vector<16x256xf32>, vector<256x128xf32>, vector<16x128xf32> -> vector<16x128xf32>
    %c0_i32 = arith.constant 0 : i32
    %10 = arith.cmpi eq, %arg1, %c0_i32 : i32
    %11 = arith.extui %10 : i1 to i32
    %c0_i32_9 = arith.constant 0 : i32
    %12 = arith.cmpi ne, %11, %c0_i32_9 : i32
    scf.if %12 {
      %c0_14 = arith.constant 0 : index
      %c0_15 = arith.constant 0 : index
      %19 = vector.load %arg6[%c0_14, %c0_15] : memref<1x128xf32, #tpu.memory_space<vmem>>, vector<1x128xf32>
      %20 = vector.broadcast %19 : vector<1x128xf32> to vector<16x128xf32>
      %21 = arith.addf %9, %20 : vector<16x128xf32>
      %c0_16 = arith.constant 0 : index
      %c0_17 = arith.constant 0 : index
      %22 = vector.load %arg10[%c0_16, %c0_17] : memref<16x128xf32, #tpu.memory_space<vmem>>, vector<16x128xf32>
      tpu.vector_store %arg10[%c0_16, %c0_17], %21 {strides = array<i32>} : memref<16x128xf32, #tpu.memory_space<vmem>>, vector<16x128xf32>,
    } else {
    }
    %c0_i32_10 = arith.constant 0 : i32
    %13 = arith.cmpi sgt, %arg1, %c0_i32_10 : i32
    %14 = arith.extui %13 : i1 to i32
    %c0_i32_11 = arith.constant 0 : i32
    %15 = arith.cmpi ne, %14, %c0_i32_11 : i32
    scf.if %15 {
      %c0_14 = arith.constant 0 : index
      %c0_15 = arith.constant 0 : index
      %19 = vector.load %arg10[%c0_14, %c0_15] : memref<16x128xf32, #tpu.memory_space<vmem>>, vector<16x128xf32>
      %20 = arith.addf %19, %9 : vector<16x128xf32>
      %c0_16 = arith.constant 0 : index
      %c0_17 = arith.constant 0 : index
      %21 = vector.load %arg10[%c0_16, %c0_17] : memref<16x128xf32, #tpu.memory_space<vmem>>, vector<16x128xf32>
      tpu.vector_store %arg10[%c0_16, %c0_17], %20 {strides = array<i32>} : memref<16x128xf32, #tpu.memory_space<vmem>>, vector<16x128xf32>,
    } else {
    }
    %c0_i32_12 = arith.constant 0 : i32
    %16 = arith.cmpi eq, %arg1, %c0_i32_12 : i32
    %17 = arith.extui %16 : i1 to i32
    %c0_i32_13 = arith.constant 0 : i32
    %18 = arith.cmpi ne, %17, %c0_i32_13 : i32
    scf.if %18 {
      %c0_14 = arith.constant 0 : index
      %c0_15 = arith.constant 0 : index
      %19 = vector.load %arg10[%c0_14, %c0_15] : memref<16x128xf32, #tpu.memory_space<vmem>>, vector<16x128xf32>
      %20 = arith.addf %0, %19 : vector<16x128xf32>
      %cst_16 = arith.constant dense<0.000000e+00> : vector<16xf32>
      %21 = vector.multi_reduction <add>, %20, %cst_16 [1] : vector<16x128xf32> to vector<16xf32>
      %22 = vector.shape_cast %21 : vector<16xf32> to vector<16x1xf32>
      %cst_17 = arith.constant 1.280000e+02 : f32
      %23 = vector.broadcast %cst_17 : f32 to vector<16x1xf32>
      %24 = arith.divf %22, %23 : vector<16x1xf32>
      %25 = vector.broadcast %24 : vector<16x1xf32> to vector<16x128xf32>
      %26 = arith.subf %20, %25 : vector<16x128xf32>
      %27 = arith.mulf %26, %26 : vector<16x128xf32>
      %cst_18 = arith.constant dense<0.000000e+00> : vector<16xf32>
      %28 = vector.multi_reduction <add>, %27, %cst_18 [1] : vector<16x128xf32> to vector<16xf32>
      %29 = vector.shape_cast %28 : vector<16xf32> to vector<16x1xf32>
      %cst_19 = arith.constant 1.280000e+02 : f32
      %30 = vector.broadcast %cst_19 : f32 to vector<16x1xf32>
      %31 = arith.divf %29, %30 : vector<16x1xf32>
      %cst_20 = arith.constant 9.99999974E-6 : f32
      %32 = vector.broadcast %cst_20 : f32 to vector<16x1xf32>
      %33 = arith.addf %31, %32 : vector<16x1xf32>
      %34 = math.rsqrt %33 : vector<16x1xf32>
      %c0_21 = arith.constant 0 : index
      %c0_22 = arith.constant 0 : index
      %35 = vector.load %arg7[%c0_21, %c0_22] : memref<1x128xf32, #tpu.memory_space<vmem>>, vector<1x128xf32>
      %36 = vector.broadcast %34 : vector<16x1xf32> to vector<16x128xf32>
      %37 = vector.broadcast %35 : vector<1x128xf32> to vector<16x128xf32>
      %38 = arith.mulf %36, %37 : vector<16x128xf32>
      %39 = arith.mulf %26, %38 : vector<16x128xf32>
      %c0_23 = arith.constant 0 : index
      %c0_24 = arith.constant 0 : index
      %40 = vector.load %arg8[%c0_23, %c0_24] : memref<1x128xf32, #tpu.memory_space<vmem>>, vector<1x128xf32>
      %41 = vector.broadcast %40 : vector<1x128xf32> to vector<16x128xf32>
      %42 = arith.addf %39, %41 : vector<16x128xf32>
      %c0_25 = arith.constant 0 : index
      %c0_26 = arith.constant 0 : index
      %43 = vector.load %arg9[%c0_25, %c0_26] : memref<16x128xf32, #tpu.memory_space<vmem>>, vector<16x128xf32>
      tpu.vector_store %arg9[%c0_25, %c0_26], %42 {strides = array<i32>} : memref<16x128xf32, #tpu.memory_space<vmem>>, vector<16x128xf32>,
    } else {
    }
    return
  }
  func.func @transform_0(%arg0: i32, %arg1: i32) -> (i32, i32) {
    %c0_i32 = arith.constant 0 : i32
    %c0_i32_0 = arith.constant 0 : i32
    return %arg0, %c0_i32 : i32, i32
  }
  func.func @transform_1(%arg0: i32, %arg1: i32) -> (i32, i32) {
    %c0_i32 = arith.constant 0 : i32
    %c0_i32_0 = arith.constant 0 : i32
    return %c0_i32, %arg1 : i32, i32
  }
  func.func @transform_2(%arg0: i32, %arg1: i32) -> (i32, i32) {
    %c0_i32 = arith.constant 0 : i32
    %c0_i32_0 = arith.constant 0 : i32
    return %c0_i32, %arg1 : i32, i32
  }
  func.func @transform_3(%arg0: i32, %arg1: i32) -> (i32, i32) {
    %c0_i32 = arith.constant 0 : i32
    %c0_i32_0 = arith.constant 0 : i32
    return %arg1, %c0_i32 : i32, i32
  }
  func.func @transform_4(%arg0: i32, %arg1: i32) -> (i32, i32) {
    %c0_i32 = arith.constant 0 : i32
    %c0_i32_0 = arith.constant 0 : i32
    %c0_i32_1 = arith.constant 0 : i32
    return %c0_i32, %c0_i32_0 : i32, i32
  }
  func.func @transform_5(%arg0: i32, %arg1: i32) -> (i32, i32) {
    %c0_i32 = arith.constant 0 : i32
    %c0_i32_0 = arith.constant 0 : i32
    %c0_i32_1 = arith.constant 0 : i32
    return %c0_i32, %c0_i32_0 : i32, i32
  }
  func.func @transform_6(%arg0: i32, %arg1: i32) -> (i32, i32) {
    %c0_i32 = arith.constant 0 : i32
    %c0_i32_0 = arith.constant 0 : i32
    %c0_i32_1 = arith.constant 0 : i32
    return %c0_i32, %c0_i32_0 : i32, i32
  }
  func.func @transform_7(%arg0: i32, %arg1: i32) -> (i32, i32) {
    %c0_i32 = arith.constant 0 : i32
    %c0_i32_0 = arith.constant 0 : i32
    return %arg0, %c0_i32 : i32, i32
  }
}

</mosaic_0001>

<llo_original>
// kernel: position_wise_ffn.1
$region0: #{position_wise_ffn.1}
  #allocation0 [shape = 'u32[]', space=smem, size = 0x4, offset = 0x4, fixed_abs, tag = 'smem constant byte address 0x4 - core index']
  #allocation1 [shape = 'u32[144,128]{1,0:T(1,128)}', space=vmem, size = 0x12000, scoped, tag = 'internal scratch']
  #allocation2 [shape = 'f32[16,128]{1,0:T(8,128)}', space=vmem, size = 0x2000, scoped, tag = 'scratch operand']
  %s0 = inlined_call_operand.hbm [shape: f32[16,128], index: 0, kind: input, shape index: {}]
  %s1 = inlined_call_operand.hbm [shape: f32[128,256], index: 1, kind: input, shape index: {}]
  %s2 = inlined_call_operand.vmem [shape: f32[1,256], index: 2, kind: input, shape index: {}]
  %s3 = inlined_call_operand.hbm [shape: f32[256,128], index: 3, kind: input, shape index: {}]
  %s4 = inlined_call_operand.vmem [shape: f32[1,128], index: 4, kind: input, shape index: {}]
  %s5 = inlined_call_operand.vmem [shape: f32[1,128], index: 5, kind: input, shape index: {}]
  %s6 = inlined_call_operand.vmem [shape: f32[1,128], index: 6, kind: input, shape index: {}]
  %s7 = inlined_call_operand.hbm [shape: f32[16,128], index: 7, kind: output, shape index: {}]
  %s8 = sld [smem:[#allocation0]]
  $region62: #{position_wise_ffn.1} parent=0
    _
  %s10 = ssub.s32 1, %s8
  %s11 = scalar_select 0, %s10, %s8
  $region1: #{position_wise_ffn.1} parent=0
    #allocation3 [shape = 'u8[8192]{0}', space=vmem, size = 0x2000, scoped, tag = 'input window, operand 0, single buffered']
    #allocation4 [shape = 's32[1]{0}', space=sflag, size = 0x4, scoped, tag = 'scoped memory for position_wise_ffn.1']
    #allocation5 [shape = 's32[1]{0}', space=sflag, size = 0x4, scoped, tag = 'scoped memory for position_wise_ffn.1']
    #allocation6 [shape = 'u8[131072]{0}', space=vmem, size = 0x20000, scoped, tag = 'input window, operand 1, single buffered']
    #allocation7 [shape = 's32[1]{0}', space=sflag, size = 0x4, scoped, tag = 'scoped memory for position_wise_ffn.1']
    #allocation8 [shape = 'u8[131072]{0}', space=vmem, size = 0x20000, scoped, tag = 'input window, operand 3, single buffered']
    #allocation9 [shape = 'u8[8192]{0}', space=vmem, size = 0x2000, scoped, tag = 'output window, operand 0, single buffered']
    %12 = vsyncpa [#allocation4], 0
    %13 = vsyncpa [#allocation7], 0
    %14 = vsyncpa [#allocation5], 0
    // Predicated region
    $region2: #{position_wise_ffn.1} parent=1 // pred_check
      _
    $region3: #{position_wise_ffn.1} parent=1 // pred_check_branch
      %16 = sbr.rel (0) target = $region5
    $region4: #{position_wise_ffn.1} parent=1 // pred_region
      %s18 = ssub.s32 256, 256
      %19 = vsyncadd [#allocation4], %s18
      %s20 = sshll.u32 [#allocation3], 4
      %s21 = int_to_ptr.vmem [resolvable:$true] %s20
      %26 = dma.hbm_to_vmem [thread:$0]  %s0, 256, %s21, [#allocation4], 128, 128, 8
    $region5: #{position_wise_ffn.1} parent=1 // pred_fallthru
      _
    // Predicated region
    $region6: #{position_wise_ffn.1} parent=1 // pred_check
      _
    $region7: #{position_wise_ffn.1} parent=1 // pred_check_branch
      %28 = sbr.rel (0) target = $region9
    $region8: #{position_wise_ffn.1} parent=1 // pred_region
      %s30 = ssub.s32 4096, 4096
      %31 = vsyncadd [#allocation7], %s30
      %s32 = sshll.u32 [#allocation6], 4
      %s33 = int_to_ptr.vmem [resolvable:$true] %s32
      %38 = dma.hbm_to_vmem [thread:$0]  %s1, 4096, %s33, [#allocation7], 256, 256, 16
    $region9: #{position_wise_ffn.1} parent=1 // pred_fallthru
      _
    // Predicated region
    $region10: #{position_wise_ffn.1} parent=1 // pred_check
      _
    $region11: #{position_wise_ffn.1} parent=1 // pred_check_branch
      %40 = sbr.rel (0) target = $region13
    $region12: #{position_wise_ffn.1} parent=1 // pred_region
      _
    $region13: #{position_wise_ffn.1} parent=1 // pred_fallthru
      _
    // Predicated region
    $region14: #{position_wise_ffn.1} parent=1 // pred_check
      _
    $region15: #{position_wise_ffn.1} parent=1 // pred_check_branch
      %42 = sbr.rel (0) target = $region17
    $region16: #{position_wise_ffn.1} parent=1 // pred_region
      %s44 = ssub.s32 4096, 4096
      %45 = vsyncadd [#allocation7], %s44
      %s46 = sshll.u32 [#allocation8], 4
      %s47 = int_to_ptr.vmem [resolvable:$true] %s46
      %52 = dma.hbm_to_vmem [thread:$0]  %s3, 4096, %s47, [#allocation7], 128, 128, 8
    $region17: #{position_wise_ffn.1} parent=1 // pred_fallthru
      _
    // Predicated region
    $region18: #{position_wise_ffn.1} parent=1 // pred_check
      _
    $region19: #{position_wise_ffn.1} parent=1 // pred_check_branch
      %54 = sbr.rel (0) target = $region21
    $region20: #{position_wise_ffn.1} parent=1 // pred_region
      _
    $region21: #{position_wise_ffn.1} parent=1 // pred_fallthru
      _
    // Predicated region
    $region22: #{position_wise_ffn.1} parent=1 // pred_check
      _
    $region23: #{position_wise_ffn.1} parent=1 // pred_check_branch
      %56 = sbr.rel (0) target = $region25
    $region24: #{position_wise_ffn.1} parent=1 // pred_region
      _
    $region25: #{position_wise_ffn.1} parent=1 // pred_fallthru
      _
    // Predicated region
    $region26: #{position_wise_ffn.1} parent=1 // pred_check
      _
    $region27: #{position_wise_ffn.1} parent=1 // pred_check_branch
      %58 = sbr.rel (0) target = $region29
    $region28: #{position_wise_ffn.1} parent=1 // pred_region
      _
    $region29: #{position_wise_ffn.1} parent=1 // pred_fallthru
      _
    // Predicated region
    $region30: #{position_wise_ffn.1} parent=1 // pred_check
      _
    $region31: #{position_wise_ffn.1} parent=1 // pred_check_branch
      %60 = sbr.rel (0) target = $region33
    $region32: #{position_wise_ffn.1} parent=1 // pred_region
      %61 = dma.done [#allocation4], 256
    $region33: #{position_wise_ffn.1} parent=1 // pred_fallthru
      _
    // Predicated region
    $region34: #{position_wise_ffn.1} parent=1 // pred_check
      _
    $region35: #{position_wise_ffn.1} parent=1 // pred_check_branch
      %63 = sbr.rel (0) target = $region37
    $region36: #{position_wise_ffn.1} parent=1 // pred_region
      %64 = dma.done [#allocation7], 4096
    $region37: #{position_wise_ffn.1} parent=1 // pred_fallthru
      _
    // Predicated region
    $region38: #{position_wise_ffn.1} parent=1 // pred_check
      _
    $region39: #{position_wise_ffn.1} parent=1 // pred_check_branch
      %66 = sbr.rel (0) target = $region41
    $region40: #{position_wise_ffn.1} parent=1 // pred_region
      %67 = dma.done [#allocation7], 4096
    $region41: #{position_wise_ffn.1} parent=1 // pred_fallthru
      _
    %v68 = vld [vmem:[#allocation3] sm:$0xff]
    %v69 = vld [vmem:[#allocation3 + $0x8] sm:$0xff]
    %v70 = vld [vmem:[#allocation6] sm:$0xff]
    %v71 = vld [vmem:[#allocation6 + $0x8] sm:$0xff]
    %v72 = vld [vmem:[#allocation6 + $0x10] sm:$0xff]
    %v73 = vld [vmem:[#allocation6 + $0x18] sm:$0xff]
    %v74 = vld [vmem:[#allocation6 + $0x20] sm:$0xff]
    %v75 = vld [vmem:[#allocation6 + $0x28] sm:$0xff]
    %v76 = vld [vmem:[#allocation6 + $0x30] sm:$0xff]
    %v77 = vld [vmem:[#allocation6 + $0x38] sm:$0xff]
    %v78 = vld [vmem:[#allocation6 + $0x40] sm:$0xff]
    %v79 = vld [vmem:[#allocation6 + $0x48] sm:$0xff]
    %v80 = vld [vmem:[#allocation6 + $0x50] sm:$0xff]
    %v81 = vld [vmem:[#allocation6 + $0x58] sm:$0xff]
    %v82 = vld [vmem:[#allocation6 + $0x60] sm:$0xff]
    %v83 = vld [vmem:[#allocation6 + $0x68] sm:$0xff]
    %v84 = vld [vmem:[#allocation6 + $0x70] sm:$0xff]
    %v85 = vld [vmem:[#allocation6 + $0x78] sm:$0xff]
    %v86 = vld [vmem:[#allocation6 + $0x80] sm:$0xff]
    %v87 = vld [vmem:[#allocation6 + $0x88] sm:$0xff]
    %v88 = vld [vmem:[#allocation6 + $0x90] sm:$0xff]
    %v89 = vld [vmem:[#allocation6 + $0x98] sm:$0xff]
    %v90 = vld [vmem:[#allocation6 + $0xa0] sm:$0xff]
    %v91 = vld [vmem:[#allocation6 + $0xa8] sm:$0xff]
    %v92 = vld [vmem:[#allocation6 + $0xb0] sm:$0xff]
    %v93 = vld [vmem:[#allocation6 + $0xb8] sm:$0xff]
    %v94 = vld [vmem:[#allocation6 + $0xc0] sm:$0xff]
    %v95 = vld [vmem:[#allocation6 + $0xc8] sm:$0xff]
    %v96 = vld [vmem:[#allocation6 + $0xd0] sm:$0xff]
    %v97 = vld [vmem:[#allocation6 + $0xd8] sm:$0xff]
    %v98 = vld [vmem:[#allocation6 + $0xe0] sm:$0xff]
    %v99 = vld [vmem:[#allocation6 + $0xe8] sm:$0xff]
    %v100 = vld [vmem:[#allocation6 + $0xf0] sm:$0xff]
    %v101 = vld [vmem:[#allocation6 + $0xf8] sm:$0xff]
    %v102 = vld [vmem:[%s2] sm:$0x3]
    %v104 = vlaneseq
    %v105 = vshrl.u32 %v104, 7
    %v106 = vsub.s32 0, %v105
    %v107 = vrot.slane %v102, %v106
    %v108 = vlaneseq
    %v109 = vshrl.u32 %v108, 7
    %v110 = vsub.s32 1, %v109
    %v111 = vrot.slane %v102, %v110
    %114 = vmatprep.subr.mxu0 %v101
    %115 = vmatpush1.msra.mxu0 %v100
    %116 = vmatprep.subr.mxu0 %v99
    %117 = vmatpush1.msra.mxu0 %v98
    %118 = vmatprep.subr.mxu0 %v97
    %119 = vmatpush1.msra.mxu0 %v96
    %120 = vmatprep.subr.mxu0 %v95
    %121 = vmatpush1.msra.mxu0 %v94
    %122 = vmatprep.subr.mxu0 %v93
    %123 = vmatpush1.msra.mxu0 %v92
    %124 = vmatprep.subr.mxu0 %v91
    %125 = vmatpush1.msra.mxu0 %v90
    %126 = vmatprep.subr.mxu0 %v89
    %127 = vmatpush1.msra.mxu0 %v88
    %128 = vmatprep.subr.mxu0 %v87
    %129 = vmatpush1.msra.mxu0 %v86
    %130 = vmatprep.subr.mxu0 %v85
    %131 = vmatpush1.msra.mxu0 %v84
    %132 = vmatprep.subr.mxu0 %v83
    %133 = vmatpush1.msra.mxu0 %v82
    %134 = vmatprep.subr.mxu0 %v81
    %135 = vmatpush1.msra.mxu0 %v80
    %136 = vmatprep.subr.mxu0 %v79
    %137 = vmatpush1.msra.mxu0 %v78
    %138 = vmatprep.subr.mxu0 %v77
    %139 = vmatpush1.msra.mxu0 %v76
    %140 = vmatprep.subr.mxu0 %v75
    %141 = vmatpush1.msra.mxu0 %v74
    %142 = vmatprep.subr.mxu0 %v73
    %143 = vmatpush1.msra.mxu0 %v72
    %144 = vmatprep.subr.mxu0 %v71
    %145 = vmatpush1.msra.mxu0 %v70
    %146 = vmatprep.subr.mxu0 0.0
    %147 = vmatpush2.msra.mxu0 0.0
    %148 = vmatprep.subr.mxu0 0.0
    %149 = vmatpush2.msra.mxu0 0.0
    %150 = vmatprep.subr.mxu0 0.0
    %151 = vmatpush2.msra.mxu0 0.0
    %152 = vmatprep.subr.mxu0 0.0
    %153 = vmatpush2.msra.mxu0 0.0
    %154 = vmatprep.subr.mxu0 0.0
    %155 = vmatpush2.msra.mxu0 0.0
    %156 = vmatprep.subr.mxu0 0.0
    %157 = vmatpush2.msra.mxu0 0.0
    %158 = vmatprep.subr.mxu0 0.0
    %159 = vmatpush2.msra.mxu0 0.0
    %160 = vmatprep.subr.mxu0 0.0
    %161 = vmatpush2.msra.mxu0 0.0
    %162 = vmatprep.subr.mxu0 0.0
    %163 = vmatpush2.msra.mxu0 0.0
    %164 = vmatprep.subr.mxu0 0.0
    %165 = vmatpush2.msra.mxu0 0.0
    %166 = vmatprep.subr.mxu0 0.0
    %167 = vmatpush2.msra.mxu0 0.0
    %168 = vmatprep.subr.mxu0 0.0
    %169 = vmatpush2.msra.mxu0 0.0
    %170 = vmatprep.subr.mxu0 0.0
    %171 = vmatpush2.msra.mxu0 0.0
    %172 = vmatprep.subr.mxu0 0.0
    %173 = vmatpush2.msra.mxu0 0.0
    %174 = vmatprep.subr.mxu0 0.0
    %175 = vmatpush2.msra.mxu0 0.0
    %176 = vmatprep.subr.mxu0 0.0
    %177 = vmatpush2.msra.mxu0 0.0
    %178 = vmatprep.mubr.f32.mxu0 0.0
    %179 = vmatmul.mubr.f32.gmra.mxu0 %v68
    %v180 = vpop.f32.mrf.mxu0
    %v181 = vadd.f32 %v107, %v180
    %v182 = vpop.f32.mrf.mxu0
    %v183 = vadd.f32 %v111, %v182
    %184 = vmatprep.mubr.f32.mxu0 0.0
    %185 = vmatmul.mubr.f32.gmra.mxu0 %v69
    %v186 = vpop.f32.mrf.mxu0
    %v187 = vadd.f32 %v107, %v186
    %v188 = vpop.f32.mrf.mxu0
    %v189 = vadd.f32 %v111, %v188
    %190 = vdwg.mxu0
    %v191 = vmax.f32 %v181, 0.0
    %v192 = vmax.f32 %v183, 0.0
    %v193 = vmax.f32 %v187, 0.0
    %v194 = vmax.f32 %v189, 0.0
    %v195 = vld [vmem:[#allocation8] sm:$0xff]
    %v196 = vld [vmem:[#allocation8 + $0x8] sm:$0xff]
    %v197 = vld [vmem:[#allocation8 + $0x10] sm:$0xff]
    %v198 = vld [vmem:[#allocation8 + $0x18] sm:$0xff]
    %v199 = vld [vmem:[#allocation8 + $0x20] sm:$0xff]
    %v200 = vld [vmem:[#allocation8 + $0x28] sm:$0xff]
    %v201 = vld [vmem:[#allocation8 + $0x30] sm:$0xff]
    %v202 = vld [vmem:[#allocation8 + $0x38] sm:$0xff]
    %v203 = vld [vmem:[#allocation8 + $0x40] sm:$0xff]
    %v204 = vld [vmem:[#allocation8 + $0x48] sm:$0xff]
    %v205 = vld [vmem:[#allocation8 + $0x50] sm:$0xff]
    %v206 = vld [vmem:[#allocation8 + $0x58] sm:$0xff]
    %v207 = vld [vmem:[#allocation8 + $0x60] sm:$0xff]
    %v208 = vld [vmem:[#allocation8 + $0x68] sm:$0xff]
    %v209 = vld [vmem:[#allocation8 + $0x70] sm:$0xff]
    %v210 = vld [vmem:[#allocation8 + $0x78] sm:$0xff]
    %v211 = vld [vmem:[#allocation8 + $0x80] sm:$0xff]
    %v212 = vld [vmem:[#allocation8 + $0x88] sm:$0xff]
    %v213 = vld [vmem:[#allocation8 + $0x90] sm:$0xff]
    %v214 = vld [vmem:[#allocation8 + $0x98] sm:$0xff]
    %v215 = vld [vmem:[#allocation8 + $0xa0] sm:$0xff]
    %v216 = vld [vmem:[#allocation8 + $0xa8] sm:$0xff]
    %v217 = vld [vmem:[#allocation8 + $0xb0] sm:$0xff]
    %v218 = vld [vmem:[#allocation8 + $0xb8] sm:$0xff]
    %v219 = vld [vmem:[#allocation8 + $0xc0] sm:$0xff]
    %v220 = vld [vmem:[#allocation8 + $0xc8] sm:$0xff]
    %v221 = vld [vmem:[#allocation8 + $0xd0] sm:$0xff]
    %v222 = vld [vmem:[#allocation8 + $0xd8] sm:$0xff]
    %v223 = vld [vmem:[#allocation8 + $0xe0] sm:$0xff]
    %v224 = vld [vmem:[#allocation8 + $0xe8] sm:$0xff]
    %v225 = vld [vmem:[#allocation8 + $0xf0] sm:$0xff]
    %v226 = vld [vmem:[#allocation8 + $0xf8] sm:$0xff]
    %227 = vmatprep.subr.mxu0 0.0
    %228 = vmatpush1.msra.mxu0 %v210
    %229 = vmatprep.subr.mxu0 0.0
    %230 = vmatpush1.msra.mxu0 %v209
    %231 = vmatprep.subr.mxu0 0.0
    %232 = vmatpush1.msra.mxu0 %v208
    %233 = vmatprep.subr.mxu0 0.0
    %234 = vmatpush1.msra.mxu0 %v207
    %235 = vmatprep.subr.mxu0 0.0
    %236 = vmatpush1.msra.mxu0 %v206
    %237 = vmatprep.subr.mxu0 0.0
    %238 = vmatpush1.msra.mxu0 %v205
    %239 = vmatprep.subr.mxu0 0.0
    %240 = vmatpush1.msra.mxu0 %v204
    %241 = vmatprep.subr.mxu0 0.0
    %242 = vmatpush1.msra.mxu0 %v203
    %243 = vmatprep.subr.mxu0 0.0
    %244 = vmatpush1.msra.mxu0 %v202
    %245 = vmatprep.subr.mxu0 0.0
    %246 = vmatpush1.msra.mxu0 %v201
    %247 = vmatprep.subr.mxu0 0.0
    %248 = vmatpush1.msra.mxu0 %v200
    %249 = vmatprep.subr.mxu0 0.0
    %250 = vmatpush1.msra.mxu0 %v199
    %251 = vmatprep.subr.mxu0 0.0
    %252 = vmatpush1.msra.mxu0 %v198
    %253 = vmatprep.subr.mxu0 0.0
    %254 = vmatpush1.msra.mxu0 %v197
    %255 = vmatprep.subr.mxu0 0.0
    %256 = vmatpush1.msra.mxu0 %v196
    %257 = vmatprep.subr.mxu0 0.0
    %258 = vmatpush1.msra.mxu0 %v195
    %259 = vmatprep.subr.mxu0 0.0
    %260 = vmatpush2.msra.mxu0 %v226
    %261 = vmatprep.subr.mxu0 0.0
    %262 = vmatpush2.msra.mxu0 %v225
    %263 = vmatprep.subr.mxu0 0.0
    %264 = vmatpush2.msra.mxu0 %v224
    %265 = vmatprep.subr.mxu0 0.0
    %266 = vmatpush2.msra.mxu0 %v223
    %267 = vmatprep.subr.mxu0 0.0
    %268 = vmatpush2.msra.mxu0 %v222
    %269 = vmatprep.subr.mxu0 0.0
    %270 = vmatpush2.msra.mxu0 %v221
    %271 = vmatprep.subr.mxu0 0.0
    %272 = vmatpush2.msra.mxu0 %v220
    %273 = vmatprep.subr.mxu0 0.0
    %274 = vmatpush2.msra.mxu0 %v219
    %275 = vmatprep.subr.mxu0 0.0
    %276 = vmatpush2.msra.mxu0 %v218
    %277 = vmatprep.subr.mxu0 0.0
    %278 = vmatpush2.msra.mxu0 %v217
    %279 = vmatprep.subr.mxu0 0.0
    %280 = vmatpush2.msra.mxu0 %v216
    %281 = vmatprep.subr.mxu0 0.0
    %282 = vmatpush2.msra.mxu0 %v215
    %283 = vmatprep.subr.mxu0 0.0
    %284 = vmatpush2.msra.mxu0 %v214
    %285 = vmatprep.subr.mxu0 0.0
    %286 = vmatpush2.msra.mxu0 %v213
    %287 = vmatprep.subr.mxu0 0.0
    %288 = vmatpush2.msra.mxu0 %v212
    %289 = vmatprep.subr.mxu0 0.0
    %290 = vmatpush2.msra.mxu0 %v211
    %291 = vmatprep.mubr.f32.mxu0 %v192
    %292 = vmatmul.mubr.f32.gmra.mxu0 %v191
    %v293 = vpop.f32.mrf.mxu0
    %v294 = vadd.f32 0.0, %v293
    %v295 = vpop.f32.mrf.mxu0
    %296 = vmatprep.mubr.f32.mxu0 %v194
    %297 = vmatmul.mubr.f32.gmra.mxu0 %v193
    %v298 = vpop.f32.mrf.mxu0
    %v299 = vadd.f32 0.0, %v298
    %v300 = vpop.f32.mrf.mxu0
    %301 = vdwg.mxu0
    %p302 = scmp.eq.s32.totalorder 0, 0
    // Predicated region
    $region42: #{position_wise_ffn.1} parent=1 // pred_check
      %p303 = pneg %p302
    $region43: #{position_wise_ffn.1} parent=1 // pred_check_branch
      %305 = sbr.rel (%p303) target = $region45
    $region44: #{position_wise_ffn.1} parent=1 // pred_region
      %v306 = vld [vmem:[%s4] sm:$0x1]
      %v308 = vlaneseq
      %v309 = vshrl.u32 %v308, 7
      %v310 = vsub.s32 0, %v309
      %v311 = vrot.slane %v306, %v310
      %v313 = vadd.f32 %v294, %v311
      %v314 = vadd.f32 %v299, %v311
      %315 = vst [vmem:[#allocation2] sm:$0xff] %v313
      %316 = vst [vmem:[#allocation2 + $0x8] sm:$0xff] %v314
    $region45: #{position_wise_ffn.1} parent=1 // pred_fallthru
      _
    %p317 = scmp.gt.s32.totalorder 0, 0
    // Predicated region
    $region46: #{position_wise_ffn.1} parent=1 // pred_check
      %p318 = pneg %p317
    $region47: #{position_wise_ffn.1} parent=1 // pred_check_branch
      %320 = sbr.rel (%p318) target = $region49
    $region48: #{position_wise_ffn.1} parent=1 // pred_region
      %v321 = vld [vmem:[#allocation2] sm:$0xff]
      %v322 = vld [vmem:[#allocation2 + $0x8] sm:$0xff]
      %v323 = vadd.f32 %v321, %v294
      %v324 = vadd.f32 %v322, %v299
      %325 = vst [vmem:[#allocation2] sm:$0xff] %v323
      %326 = vst [vmem:[#allocation2 + $0x8] sm:$0xff] %v324
    $region49: #{position_wise_ffn.1} parent=1 // pred_fallthru
      _
    // Predicated region
    $region50: #{position_wise_ffn.1} parent=1 // pred_check
      %p327 = pneg %p302
    $region51: #{position_wise_ffn.1} parent=1 // pred_check_branch
      %329 = sbr.rel (%p327) target = $region53
    $region52: #{position_wise_ffn.1} parent=1 // pred_region
      %v330 = vld [vmem:[#allocation2] sm:$0xff]
      %v331 = vld [vmem:[#allocation2 + $0x8] sm:$0xff]
      %v332 = vadd.f32 %v68, %v330
      %v333 = vadd.f32 %v69, %v331
      %334 = vadd.xlane.f32.xlu0 %v332
      %v335 = vpop.xlane.xlu0 %334
      %336 = vadd.xlane.f32.xlu0 %v333
      %v337 = vpop.xlane.xlu0 %336
      %v338 = vrcp.pop 128.0
      %v339 = vmul.f32 %v335, %v338
      %v340 = vmul.f32 %v337, %v338
      %v341 = vsub.f32 %v332, %v339
      %v342 = vsub.f32 %v333, %v340
      %v343 = vmul.f32 %v341, %v341
      %v344 = vmul.f32 %v342, %v342
      %345 = vadd.xlane.f32.xlu0 %v343
      %v346 = vpop.xlane.xlu0 %345
      %347 = vadd.xlane.f32.xlu0 %v344
      %v348 = vpop.xlane.xlu0 %347
      %v349 = vmul.f32 %v346, %v338
      %v350 = vmul.f32 %v348, %v338
      %v351 = vadd.f32 %v349, 1e-05
      %v352 = vadd.f32 %v350, 1e-05
      %v353 = vrsqrt.pop %v351
      %v354 = vrsqrt.pop %v352
      %v355 = vld [vmem:[%s5] sm:$0x1]
      %v357 = vlaneseq
      %v358 = vshrl.u32 %v357, 7
      %v359 = vsub.s32 0, %v358
      %v360 = vrot.slane %v355, %v359
      %v362 = vmul.f32 %v353, %v360
      %v363 = vmul.f32 %v354, %v360
      %v364 = vmul.f32 %v341, %v362
      %v365 = vmul.f32 %v342, %v363
      %v366 = vld [vmem:[%s6] sm:$0x1]
      %v368 = vlaneseq
      %v369 = vshrl.u32 %v368, 7
      %v370 = vsub.s32 0, %v369
      %v371 = vrot.slane %v366, %v370
      %v373 = vadd.f32 %v364, %v371
      %v374 = vadd.f32 %v365, %v371
      %375 = vst [vmem:[#allocation9] sm:$0xff] %v373
      %376 = vst [vmem:[#allocation9 + $0x8] sm:$0xff] %v374
    $region53: #{position_wise_ffn.1} parent=1 // pred_fallthru
      _
    // Predicated region
    $region54: #{position_wise_ffn.1} parent=1 // pred_check
      _
    $region55: #{position_wise_ffn.1} parent=1 // pred_check_branch
      %378 = sbr.rel (0) target = $region57
    $region56: #{position_wise_ffn.1} parent=1 // pred_region
      %s380 = ssub.s32 256, 256
      %381 = vsyncadd [#allocation5], %s380
      %s382 = sshll.u32 [#allocation9], 4
      %s383 = int_to_ptr.vmem [resolvable:$true] %s382
      %388 = dma.vmem_to_hbm [thread:$0]  %s383, 256, %s7, [#allocation5], 128, 128, 8
    $region57: #{position_wise_ffn.1} parent=1 // pred_fallthru
      _
    // Predicated region
    $region58: #{position_wise_ffn.1} parent=1 // pred_check
      _
    $region59: #{position_wise_ffn.1} parent=1 // pred_check_branch
      %390 = sbr.rel (0) target = $region61
    $region60: #{position_wise_ffn.1} parent=1 // pred_region
      %391 = dma.done [#allocation5], 256
    $region61: #{position_wise_ffn.1} parent=1 // pred_fallthru
      _
    %392 = vsyncpa [#allocation4], 1
    %393 = vsyncpa [#allocation7], 1
    %394 = vsyncpa [#allocation5], 1

</llo_original>
